<compile_context>
chip_gen: v6e
topology: v6e:2x2x1
jax: 0.10.0
libtpu: 0.0.40
codegen_flags: <defaults>
</compile_context>

<pallas_src>
import functools

import jax
import jax.numpy as jnp
from jax.experimental import pallas as pl
from jax.experimental.pallas import tpu as pltpu


def _fused_sage_kernel(adj_ref, x_ref, agg1_ref, ws1_ref, wn1_ref, b1_ref,
                       ws2_ref, wn2_ref, b2_ref,
                       out_ref, h1_ref, agg2_ref, inv_ref,
                       *, tile_n, w1, reassoc1, reassoc2, adj_resident):
    phase = pl.program_id(0)            # 0: layer 1, 1: layer 2
    i = pl.program_id(1)                # node-row tile index
    row0 = pl.multiple_of(i * tile_n, tile_n)

    # adj rows of this tile (bf16, exact 0/1).  When fully resident the whole adjacency
    # is DMA'd once (constant block index) and sliced here.
    if adj_resident:
        adj = adj_ref[pl.ds(row0, tile_n), :]
    else:
        adj = adj_ref[...]

    @pl.when(jnp.logical_and(phase == 0, i == 0))
    def _():
        # Deterministic init of the resident output block; rows are overwritten in
        # phase 1 and the block is written back to HBM once, at the end of the grid.
        out_ref[...] = jnp.zeros_like(out_ref)

    @pl.when(phase == 0)
    def _():
        # Single MXU pass: adj @ [Y1 | 1].  The last column is the in-degree, so no f32
        # copy of the adj tile and no cross-lane reduction are needed for the mean.
        prod = jnp.dot(adj, agg1_ref[...], preferred_element_type=jnp.float32)
        deg = prod[:, w1:w1 + 1]
        inv = jnp.where(deg > 0.0, 1.0 / jnp.maximum(deg, 1.0), 0.0)
        agg1 = prod[:, :w1] * inv
        if reassoc1:
            # agg1_ref already holds x @ W_neigh1 (hoisted: computed once in the wrapper).
            neigh1 = agg1
        else:
            neigh1 = jnp.dot(agg1, wn1_ref[...], preferred_element_type=jnp.float32)
        h1 = (jnp.dot(x_ref[...], ws1_ref[...], preferred_element_type=jnp.float32)
              + neigh1 + b1_ref[...])
        h1 = jnp.maximum(h1, 0.0)                                    # ReLU

        # Persist for phase 1: f32 h1 (self term), bf16 aggregation operand, 1/deg.
        h1_ref[pl.ds(row0, tile_n), :] = h1
        inv_ref[pl.ds(row0, tile_n), :] = inv
        if reassoc2:
            agg2_ref[pl.ds(row0, tile_n), :] = jnp.dot(
                h1, wn2_ref[...], preferred_element_type=jnp.float32
            ).astype(jnp.bfloat16)
        else:
            agg2_ref[pl.ds(row0, tile_n), :] = h1.astype(jnp.bfloat16)

    @pl.when(phase == 1)
    def _():
        inv = inv_ref[pl.ds(row0, tile_n), :]           # cached; not recomputed from adj
        neigh2 = jnp.dot(adj, agg2_ref[...], preferred_element_type=jnp.float32) * inv
        if not reassoc2:
            neigh2 = jnp.dot(neigh2, wn2_ref[...], preferred_element_type=jnp.float32)
        h1_tile = h1_ref[pl.ds(row0, tile_n), :]
        out = (jnp.dot(h1_tile, ws2_ref[...], preferred_element_type=jnp.float32)
               + neigh2 + b2_ref[...])
        out_ref[pl.ds(row0, tile_n), :] = out.astype(out_ref.dtype)


def _full_spec(shape):
    # Whole-array block, constant index (block_shape == array shape satisfies (8,128)).
    return pl.BlockSpec(shape, lambda p, i: (0,) * len(shape))


def sage_forward(adj, x, params, *, tile_n=None):
    """SAGE.forward: conv1 -> relu -> conv2, fused into one pallas_call."""
    n, fin = x.shape
    hid = params["w_self1"].shape[1]
    out_feats = params["w_self2"].shape[1]

    # Reassociation ((adj @ (h@W))*inv == ((adj@h)*inv)@W): always feed the N x N
    # contraction the *narrower* feature operand.
    reassoc1 = fin > hid          # layer 1 contracts adj against min(fin, hid) lanes
    reassoc2 = out_feats < hid    # layer 2 contracts adj against min(hid, out) lanes
    w1 = hid if reassoc1 else fin
    w2 = out_feats if reassoc2 else hid

    # ---- wrapper-side precompute (once; removes per-tile redundant GEMMs / casts) ----
    adj_bf16 = adj.astype(jnp.bfloat16)                       # 0/1 is exact in bf16
    if reassoc1:
        y1 = jnp.dot(x, params["w_neigh1"]).astype(jnp.bfloat16)   # hoisted x @ W_neigh1
    else:
        y1 = x.astype(jnp.bfloat16)
    # Ones column: the in-degree falls out of the same MXU pass as the aggregation.
    # (Costs an extra lane group only if w1 is an exact multiple of 128.)
    agg1_aug = jnp.concatenate([y1, jnp.ones((n, 1), jnp.bfloat16)], axis=1)

    # ---- tiling / residency -----------------------------------------------------------
    if tile_n is None:
        if n <= 512:
            tile_n = n
        else:
            tile_n = 512
            # Shrink until the double-buffered bf16 adj row block fits a conservative
            # cross-generation budget (v7x has only 64 MiB physical VMEM) and divides n.
            while tile_n > 16 and (n % tile_n != 0 or 2 * tile_n * n * 2 > 24 * (1 << 20)):
                tile_n //= 2
    assert n % tile_n == 0
    # Row offsets into the bf16 scratch must stay aligned to the (16, 128) bf16 tile.
    assert tile_n == n or tile_n % 16 == 0
    num_tiles = n // tile_n

    def vmem_estimate(adj_rows):
        return (2 * adj_rows * n * 2                        # adj block (bf16, 2 buffers)
                + 2 * tile_n * fin * 4                      # x row tile
                + 2 * n * (w1 + 1) * 2                      # [Y1 | 1] (bf16, resident)
                + 2 * 4 * (2 * fin * hid + 2 * hid * out_feats + hid + out_feats)
                + 2 * n * out_feats * 4                     # resident output block
                + n * hid * 4                               # h1 scratch (f32)
                + n * w2 * 2                                # agg2 scratch (bf16)
                + n * 128 * 4)                              # inv_deg scratch (lane-padded)

    # adj is the dominant HBM operand and the kernel is bandwidth bound: keep it fully
    # resident (one DMA total instead of one per phase) whenever it comfortably fits.
    adj_resident = vmem_estimate(n) <= 12 * (1 << 20)
    est_bytes = vmem_estimate(n if adj_resident else tile_n)

    if adj_resident:
        adj_spec = pl.BlockSpec((n, n), lambda p, i: (0, 0))
    else:
        adj_spec = pl.BlockSpec((tile_n, n), lambda p, i: (i, 0))

    kernel = functools.partial(_fused_sage_kernel, tile_n=tile_n, w1=w1,
                               reassoc1=reassoc1, reassoc2=reassoc2,
                               adj_resident=adj_resident)

    cp_kwargs = dict(
        # Both axes sequential: phase 1 consumes per-core VMEM scratch written by every
        # phase-0 row tile, so neither axis may be megacore-parallel in this fused form.
        dimension_semantics=("arbitrary", "arbitrary"),
    )
    if est_bytes > 12 * (1 << 20):
        cp_kwargs["vmem_limit_bytes"] = int(min(est_bytes * 3 // 2, 128 * (1 << 20)))

    grid = (2, num_tiles)  # (phase, node-row tile), executed sequentially on one core

    return pl.pallas_call(
        kernel,
        out_shape=jax.ShapeDtypeStruct((n, out_feats), jnp.float32),
        grid_spec=pltpu.PrefetchScalarGridSpec(
            num_scalar_prefetch=0,
            grid=grid,
            in_specs=[
                adj_spec,                                           # adjacency (bf16)
                pl.BlockSpec((tile_n, fin), lambda p, i: (i, 0)),   # x rows (self term)
                _full_spec((n, w1 + 1)),                            # [Y1 | 1] (bf16)
                _full_spec(params["w_self1"].shape),
                _full_spec(params["w_neigh1"].shape),               # unused if reassoc1
                _full_spec(params["b1"].shape),
                _full_spec(params["w_self2"].shape),
                _full_spec(params["w_neigh2"].shape),
                _full_spec(params["b2"].shape),
            ],
            # Single resident output block -> written back to HBM once, at the end.
            out_specs=pl.BlockSpec((n, out_feats), lambda p, i: (0, 0)),
            scratch_shapes=[
                pltpu.VMEM((n, hid), jnp.float32),        # h1 = relu(conv1(x)), f32
                pltpu.VMEM((n, w2), jnp.bfloat16),        # layer-2 aggregation operand
                pltpu.VMEM((n, 1), jnp.float32),          # 1/deg, cached for phase 1
            ],
        ),
        compiler_params=pltpu.CompilerParams(**cp_kwargs),
    )(adj_bf16, x, agg1_aug,
      params["w_self1"], params["w_neigh1"], params["b1"],
      params["w_self2"], params["w_neigh2"], params["b2"])


def sage_reference(adj, x, params):
    """Pure-JAX f32 reference of the same semantics (loose correctness check)."""
    deg = jnp.sum(adj, axis=1, keepdims=True)
    inv = jnp.where(deg > 0.0, 1.0 / jnp.maximum(deg, 1.0), 0.0)
    neigh1 = ((adj @ x) * inv) @ params["w_neigh1"]
    h = jnp.maximum(x @ params["w_self1"] + neigh1 + params["b1"], 0.0)
    neigh2 = ((adj @ h) * inv) @ params["w_neigh2"]
    return h @ params["w_self2"] + neigh2 + params["b2"]


def init_params(key, in_feats, hid_feats, out_feats):
    """Deterministic synthetic init (weights stored as (in, out); used as x @ W)."""
    ks = jax.random.split(key, 6)
    s1 = 1.0 / jnp.sqrt(in_feats)
    s2 = 1.0 / jnp.sqrt(hid_feats)
    return {
        "w_self1":  jax.random.uniform(ks[0], (in_feats, hid_feats), jnp.float32, -s1, s1),
        "w_neigh1": jax.random.uniform(ks[1], (in_feats, hid_feats), jnp.float32, -s1, s1),
        "b1":       jax.random.uniform(ks[2], (1, hid_feats), jnp.float32, -s1, s1),
        "w_self2":  jax.random.uniform(ks[3], (hid_feats, out_feats), jnp.float32, -s2, s2),
        "w_neigh2": jax.random.uniform(ks[4], (hid_feats, out_feats), jnp.float32, -s2, s2),
        "b2":       jax.random.uniform(ks[5], (1, out_feats), jnp.float32, -s2, s2),
    }


if __name__ == "__main__":
    # Small synthetic graph: N=16 nodes, in_feats=16, hid_feats=32, out_feats=8.
    N, IN_FEATS, HID_FEATS, OUT_FEATS = 16, 16, 32, 8

    key = jax.random.PRNGKey(0)
    k_adj, k_x, k_par = jax.random.split(key, 3)

    # Random directed graph as dense adjacency (adj[i, j] = 1 iff edge j -> i), no self loops.
    adj = (jax.random.uniform(k_adj, (N, N)) < 0.3).astype(jnp.float32)
    adj = adj * (1.0 - jnp.eye(N, dtype=jnp.float32))

    x = jax.random.normal(k_x, (N, IN_FEATS), dtype=jnp.float32)
    params = init_params(k_par, IN_FEATS, HID_FEATS, OUT_FEATS)

    out = jax.jit(sage_forward)(adj, x, params)
    jax.block_until_ready(out)

    assert out.shape == (N, OUT_FEATS) and out.dtype == jnp.float32
    assert bool(jnp.all(jnp.isfinite(out)))

    # Loose tolerance: only rounding source vs the f32 reference is the bf16 cast of the
    # feature operands feeding the two N x N contractions (adj itself is exact 0/1).
    ref = sage_reference(adj, x, params)
    max_err = float(jnp.max(jnp.abs(out - ref)))
    assert max_err < 5e-2, f"max abs error {max_err}"

    print("KERNEL_OK")
</pallas_src>

<mosaic_0001>
module attributes {stable_mosaic.version = 11 : i64} {
  func.func @_fused_sage_kernel(%arg0: i32, %arg1: i32, %arg2: memref<16x16xbf16, #tpu.memory_space<vmem>>, %arg3: memref<16x16xf32, #tpu.memory_space<vmem>>, %arg4: memref<16x17xbf16, #tpu.memory_space<vmem>>, %arg5: memref<16x32xf32, #tpu.memory_space<vmem>>, %arg6: memref<16x32xf32, #tpu.memory_space<vmem>>, %arg7: memref<1x32xf32, #tpu.memory_space<vmem>>, %arg8: memref<32x8xf32, #tpu.memory_space<vmem>>, %arg9: memref<32x8xf32, #tpu.memory_space<vmem>>, %arg10: memref<1x8xf32, #tpu.memory_space<vmem>>, %arg11: memref<16x8xf32, #tpu.memory_space<vmem>>, %arg12: memref<16x32xf32, #tpu.memory_space<vmem>>, %arg13: memref<16x8xbf16, #tpu.memory_space<vmem>>, %arg14: memref<16x1xf32, #tpu.memory_space<vmem>>) attributes {dimension_semantics = [#tpu.dimension_semantics<arbitrary>, #tpu.dimension_semantics<arbitrary>], iteration_bounds = array<i64: 2, 1>, scalar_prefetch = 0 : i64, scratch_operands = 3 : i64, tpu.core_type = #tpu.core_type<tc>, window_params = [{pipeline_mode = #tpu.pipeline_mode<synchronous>, transform_indices = @transform_0, window_bounds = array<i64: 16, 16>}, {transform_indices = @transform_1, window_bounds = array<i64: 16, 16>}, {pipeline_mode = #tpu.pipeline_mode<synchronous>, transform_indices = @transform_2, window_bounds = array<i64: 16, 17>}, {pipeline_mode = #tpu.pipeline_mode<synchronous>, transform_indices = @transform_3, window_bounds = array<i64: 16, 32>}, {pipeline_mode = #tpu.pipeline_mode<synchronous>, transform_indices = @transform_4, window_bounds = array<i64: 16, 32>}, {pipeline_mode = #tpu.pipeline_mode<synchronous>, transform_indices = @transform_5, window_bounds = array<i64: 1, 32>}, {pipeline_mode = #tpu.pipeline_mode<synchronous>, transform_indices = @transform_6, window_bounds = array<i64: 32, 8>}, {pipeline_mode = #tpu.pipeline_mode<synchronous>, transform_indices = @transform_7, window_bounds = array<i64: 32, 8>}, {pipeline_mode = #tpu.pipeline_mode<synchronous>, transform_indices = @transform_8, window_bounds = array<i64: 1, 8>}, {pipeline_mode = #tpu.pipeline_mode<synchronous>, transform_indices = @transform_9, window_bounds = array<i64: 16, 8>}]} {
    %c16_i32 = arith.constant 16 : i32
    %0 = arith.muli %arg1, %c16_i32 : i32
    %1 = tpu.assume_multiple %0, 16 : i32
    %2 = arith.index_cast %1 : i32 to index
    %c0 = arith.constant 0 : index
    %3 = vector.load %arg2[%2, %c0] : memref<16x16xbf16, #tpu.memory_space<vmem>>, vector<16x16xbf16>
    %c0_i32 = arith.constant 0 : i32
    %4 = arith.cmpi eq, %arg0, %c0_i32 : i32
    %c0_i32_0 = arith.constant 0 : i32
    %5 = arith.cmpi eq, %arg1, %c0_i32_0 : i32
    %6 = arith.andi %4, %5 : i1
    %7 = arith.extui %6 : i1 to i32
    %c0_i32_1 = arith.constant 0 : i32
    %8 = arith.cmpi ne, %7, %c0_i32_1 : i32
    scf.if %8 {
      %cst = arith.constant 0.000000e+00 : f32
      %15 = vector.broadcast %cst : f32 to vector<16x8xf32>
      %c0_5 = arith.constant 0 : index
      %c0_6 = arith.constant 0 : index
      %16 = vector.load %arg11[%c0_5, %c0_6] : memref<16x8xf32, #tpu.memory_space<vmem>>, vector<16x8xf32>
      tpu.vector_store %arg11[%c0_5, %c0_6], %15 {strides = array<i32>} : memref<16x8xf32, #tpu.memory_space<vmem>>, vector<16x8xf32>,
    } else {
    }
    %c0_i32_2 = arith.constant 0 : i32
    %9 = arith.cmpi eq, %arg0, %c0_i32_2 : i32
    %10 = arith.extui %9 : i1 to i32
    %c0_i32_3 = arith.constant 0 : i32
    %11 = arith.cmpi ne, %10, %c0_i32_3 : i32
    scf.if %11 {
      %c0_5 = arith.constant 0 : index
      %c0_6 = arith.constant 0 : index
      %15 = vector.load %arg4[%c0_5, %c0_6] : memref<16x17xbf16, #tpu.memory_space<vmem>>, vector<16x17xbf16>
      %cst = arith.constant dense<0.000000e+00> : vector<16x17xf32>
      %16 = tpu.matmul %3, %15, %cst {dimension_numbers = #tpu.dot_dimension_numbers<[1], [0], [0], [1], [0, 0, 1, 1], [], []>} : vector<16x16xbf16>, vector<16x17xbf16>, vector<16x17xf32> -> vector<16x17xf32>
      %17 = vector.extract_strided_slice %16 {offsets = [0, 16], sizes = [16, 1], strides = [1, 1]} : vector<16x17xf32> to vector<16x1xf32>
      %cst_7 = arith.constant 0.000000e+00 : f32
      %18 = vector.broadcast %cst_7 : f32 to vector<16x1xf32>
      %19 = arith.cmpf ogt, %17, %18 : vector<16x1xf32>
      %cst_8 = arith.constant 1.000000e+00 : f32
      %20 = vector.broadcast %cst_8 : f32 to vector<16x1xf32>
      %21 = arith.maximumf %17, %20 : vector<16x1xf32>
      %cst_9 = arith.constant 1.000000e+00 : f32
      %22 = vector.broadcast %cst_9 : f32 to vector<16x1xf32>
      %23 = arith.divf %22, %21 : vector<16x1xf32>
      %cst_10 = arith.constant 0.000000e+00 : f32
      %24 = vector.broadcast %cst_10 : f32 to vector<16x1xf32>
      %25 = arith.select %19, %23, %24 : vector<16x1xi1>, vector<16x1xf32>
      %26 = vector.extract_strided_slice %16 {offsets = [0, 0], sizes = [16, 16], strides = [1, 1]} : vector<16x17xf32> to vector<16x16xf32>
      %27 = vector.broadcast %25 : vector<16x1xf32> to vector<16x16xf32>
      %28 = arith.mulf %26, %27 : vector<16x16xf32>
      %c0_11 = arith.constant 0 : index
      %c0_12 = arith.constant 0 : index
      %29 = vector.load %arg6[%c0_11, %c0_12] : memref<16x32xf32, #tpu.memory_space<vmem>>, vector<16x32xf32>
      %cst_13 = arith.constant dense<0.000000e+00> : vector<16x32xf32>
      %30 = tpu.matmul %28, %29, %cst_13 {dimension_numbers = #tpu.dot_dimension_numbers<[1], [0], [0], [1], [0, 0, 1, 1], [], []>} : vector<16x16xf32>, vector<16x32xf32>, vector<16x32xf32> -> vector<16x32xf32>
      %c0_14 = arith.constant 0 : index
      %c0_15 = arith.constant 0 : index
      %31 = vector.load %arg3[%c0_14, %c0_15] : memref<16x16xf32, #tpu.memory_space<vmem>>, vector<16x16xf32>
      %c0_16 = arith.constant 0 : index
      %c0_17 = arith.constant 0 : index
      %32 = vector.load %arg5[%c0_16, %c0_17] : memref<16x32xf32, #tpu.memory_space<vmem>>, vector<16x32xf32>
      %cst_18 = arith.constant dense<0.000000e+00> : vector<16x32xf32>
      %33 = tpu.matmul %31, %32, %cst_18 {dimension_numbers = #tpu.dot_dimension_numbers<[1], [0], [0], [1], [0, 0, 1, 1], [], []>} : vector<16x16xf32>, vector<16x32xf32>, vector<16x32xf32> -> vector<16x32xf32>
      %34 = arith.addf %33, %30 : vector<16x32xf32>
      %c0_19 = arith.constant 0 : index
      %c0_20 = arith.constant 0 : index
      %35 = vector.load %arg7[%c0_19, %c0_20] : memref<1x32xf32, #tpu.memory_space<vmem>>, vector<1x32xf32>
      %36 = vector.broadcast %35 : vector<1x32xf32> to vector<16x32xf32>
      %37 = arith.addf %34, %36 : vector<16x32xf32>
      %cst_21 = arith.constant 0.000000e+00 : f32
      %38 = vector.broadcast %cst_21 : f32 to vector<16x32xf32>
      %39 = arith.maximumf %37, %38 : vector<16x32xf32>
      %40 = arith.index_cast %1 : i32 to index
      %c0_22 = arith.constant 0 : index
      %41 = vector.load %arg12[%40, %c0_22] : memref<16x32xf32, #tpu.memory_space<vmem>>, vector<16x32xf32>
      tpu.vector_store %arg12[%40, %c0_22], %39 {strides = array<i32>} : memref<16x32xf32, #tpu.memory_space<vmem>>, vector<16x32xf32>,
      %42 = arith.index_cast %1 : i32 to index
      %c0_23 = arith.constant 0 : index
      %43 = vector.load %arg14[%42, %c0_23] : memref<16x1xf32, #tpu.memory_space<vmem>>, vector<16x1xf32>
      tpu.vector_store %arg14[%42, %c0_23], %25 {strides = array<i32>} : memref<16x1xf32, #tpu.memory_space<vmem>>, vector<16x1xf32>,
      %c0_24 = arith.constant 0 : index
      %c0_25 = arith.constant 0 : index
      %44 = vector.load %arg9[%c0_24, %c0_25] : memref<32x8xf32, #tpu.memory_space<vmem>>, vector<32x8xf32>
      %cst_26 = arith.constant dense<0.000000e+00> : vector<16x8xf32>
      %45 = tpu.matmul %39, %44, %cst_26 {dimension_numbers = #tpu.dot_dimension_numbers<[1], [0], [0], [1], [0, 0, 1, 1], [], []>} : vector<16x32xf32>, vector<32x8xf32>, vector<16x8xf32> -> vector<16x8xf32>
      %46 = arith.truncf %45 : vector<16x8xf32> to vector<16x8xbf16>
      %47 = arith.index_cast %1 : i32 to index
      %c0_27 = arith.constant 0 : index
      %48 = vector.load %arg13[%47, %c0_27] : memref<16x8xbf16, #tpu.memory_space<vmem>>, vector<16x8xbf16>
      tpu.vector_store %arg13[%47, %c0_27], %46 {strides = array<i32>} : memref<16x8xbf16, #tpu.memory_space<vmem>>, vector<16x8xbf16>,
    } else {
    }
    %c1_i32 = arith.constant 1 : i32
    %12 = arith.cmpi eq, %arg0, %c1_i32 : i32
    %13 = arith.extui %12 : i1 to i32
    %c0_i32_4 = arith.constant 0 : i32
    %14 = arith.cmpi ne, %13, %c0_i32_4 : i32
    scf.if %14 {
      %15 = arith.index_cast %1 : i32 to index
      %c0_5 = arith.constant 0 : index
      %16 = vector.load %arg14[%15, %c0_5] : memref<16x1xf32, #tpu.memory_space<vmem>>, vector<16x1xf32>
      %c0_6 = arith.constant 0 : index
      %c0_7 = arith.constant 0 : index
      %17 = vector.load %arg13[%c0_6, %c0_7] : memref<16x8xbf16, #tpu.memory_space<vmem>>, vector<16x8xbf16>
      %cst = arith.constant dense<0.000000e+00> : vector<16x8xf32>
      %18 = tpu.matmul %3, %17, %cst {dimension_numbers = #tpu.dot_dimension_numbers<[1], [0], [0], [1], [0, 0, 1, 1], [], []>} : vector<16x16xbf16>, vector<16x8xbf16>, vector<16x8xf32> -> vector<16x8xf32>
      %19 = vector.broadcast %16 : vector<16x1xf32> to vector<16x8xf32>
      %20 = arith.mulf %18, %19 : vector<16x8xf32>
      %21 = arith.index_cast %1 : i32 to index
      %c0_8 = arith.constant 0 : index
      %22 = vector.load %arg12[%21, %c0_8] : memref<16x32xf32, #tpu.memory_space<vmem>>, vector<16x32xf32>
      %c0_9 = arith.constant 0 : index
      %c0_10 = arith.constant 0 : index
      %23 = vector.load %arg8[%c0_9, %c0_10] : memref<32x8xf32, #tpu.memory_space<vmem>>, vector<32x8xf32>
      %cst_11 = arith.constant dense<0.000000e+00> : vector<16x8xf32>
      %24 = tpu.matmul %22, %23, %cst_11 {dimension_numbers = #tpu.dot_dimension_numbers<[1], [0], [0], [1], [0, 0, 1, 1], [], []>} : vector<16x32xf32>, vector<32x8xf32>, vector<16x8xf32> -> vector<16x8xf32>
      %25 = arith.addf %24, %20 : vector<16x8xf32>
      %c0_12 = arith.constant 0 : index
      %c0_13 = arith.constant 0 : index
      %26 = vector.load %arg10[%c0_12, %c0_13] : memref<1x8xf32, #tpu.memory_space<vmem>>, vector<1x8xf32>
      %27 = vector.broadcast %26 : vector<1x8xf32> to vector<16x8xf32>
      %28 = arith.addf %25, %27 : vector<16x8xf32>
      %29 = arith.index_cast %1 : i32 to index
      %c0_14 = arith.constant 0 : index
      %30 = vector.load %arg11[%29, %c0_14] : memref<16x8xf32, #tpu.memory_space<vmem>>, vector<16x8xf32>
      tpu.vector_store %arg11[%29, %c0_14], %28 {strides = array<i32>} : memref<16x8xf32, #tpu.memory_space<vmem>>, vector<16x8xf32>,
    } else {
    }
    return
  }
  func.func @transform_0(%arg0: i32, %arg1: i32) -> (i32, i32) {
    %c0_i32 = arith.constant 0 : i32
    %c0_i32_0 = arith.constant 0 : i32
    %c0_i32_1 = arith.constant 0 : i32
    return %c0_i32, %c0_i32_0 : i32, i32
  }
  func.func @transform_1(%arg0: i32, %arg1: i32) -> (i32, i32) {
    %c0_i32 = arith.constant 0 : i32
    %c0_i32_0 = arith.constant 0 : i32
    return %arg1, %c0_i32 : i32, i32
  }
  func.func @transform_2(%arg0: i32, %arg1: i32) -> (i32, i32) {
    %c0_i32 = arith.constant 0 : i32
    %c0_i32_0 = arith.constant 0 : i32
    %c0_i32_1 = arith.constant 0 : i32
    return %c0_i32, %c0_i32_0 : i32, i32
  }
  func.func @transform_3(%arg0: i32, %arg1: i32) -> (i32, i32) {
    %c0_i32 = arith.constant 0 : i32
    %c0_i32_0 = arith.constant 0 : i32
    %c0_i32_1 = arith.constant 0 : i32
    return %c0_i32, %c0_i32_0 : i32, i32
  }
  func.func @transform_4(%arg0: i32, %arg1: i32) -> (i32, i32) {
    %c0_i32 = arith.constant 0 : i32
    %c0_i32_0 = arith.constant 0 : i32
    %c0_i32_1 = arith.constant 0 : i32
    return %c0_i32, %c0_i32_0 : i32, i32
  }
  func.func @transform_5(%arg0: i32, %arg1: i32) -> (i32, i32) {
    %c0_i32 = arith.constant 0 : i32
    %c0_i32_0 = arith.constant 0 : i32
    %c0_i32_1 = arith.constant 0 : i32
    return %c0_i32, %c0_i32_0 : i32, i32
  }
  func.func @transform_6(%arg0: i32, %arg1: i32) -> (i32, i32) {
    %c0_i32 = arith.constant 0 : i32
    %c0_i32_0 = arith.constant 0 : i32
    %c0_i32_1 = arith.constant 0 : i32
    return %c0_i32, %c0_i32_0 : i32, i32
  }
  func.func @transform_7(%arg0: i32, %arg1: i32) -> (i32, i32) {
    %c0_i32 = arith.constant 0 : i32
    %c0_i32_0 = arith.constant 0 : i32
    %c0_i32_1 = arith.constant 0 : i32
    return %c0_i32, %c0_i32_0 : i32, i32
  }
  func.func @transform_8(%arg0: i32, %arg1: i32) -> (i32, i32) {
    %c0_i32 = arith.constant 0 : i32
    %c0_i32_0 = arith.constant 0 : i32
    %c0_i32_1 = arith.constant 0 : i32
    return %c0_i32, %c0_i32_0 : i32, i32
  }
  func.func @transform_9(%arg0: i32, %arg1: i32) -> (i32, i32) {
    %c0_i32 = arith.constant 0 : i32
    %c0_i32_0 = arith.constant 0 : i32
    %c0_i32_1 = arith.constant 0 : i32
    return %c0_i32, %c0_i32_0 : i32, i32
  }
}

</mosaic_0001>

<llo_original>
// kernel: sage_forward.1
$region0: #{sage_forward.1}
  #allocation0 [shape = 'u32[]', space=smem, size = 0x4, offset = 0x4, fixed_abs, tag = 'smem constant byte address 0x4 - core index']
  #allocation1 [shape = 'u32[144,128]{1,0:T(1,128)}', space=vmem, size = 0x12000, scoped, tag = 'internal scratch']
  #allocation2 [shape = 'f32[16,32]{1,0:T(8,128)}', space=vmem, size = 0x2000, scoped, tag = 'scratch operand']
  #allocation3 [shape = 'bf16[16,8]{1,0:T(8,128)(2,1)}', space=vmem, size = 0x1000, scoped, tag = 'scratch operand']
  #allocation4 [shape = 'f32[16,1]{1,0:T(8,128)}', space=vmem, size = 0x2000, scoped, tag = 'scratch operand']
  %s0 = inlined_call_operand.vmem [shape: bf16[16,16], index: 0, kind: input, shape index: {}]
  %s1 = inlined_call_operand.vmem [shape: f32[16,16], index: 1, kind: input, shape index: {}]
  %s2 = inlined_call_operand.vmem [shape: bf16[16,17], index: 2, kind: input, shape index: {}]
  %s3 = inlined_call_operand.vmem [shape: f32[16,32], index: 3, kind: input, shape index: {}]
  %s4 = inlined_call_operand.vmem [shape: f32[16,32], index: 4, kind: input, shape index: {}]
  %s5 = inlined_call_operand.vmem [shape: f32[1,32], index: 5, kind: input, shape index: {}]
  %s6 = inlined_call_operand.vmem [shape: f32[32,8], index: 6, kind: input, shape index: {}]
  %s7 = inlined_call_operand.vmem [shape: f32[32,8], index: 7, kind: input, shape index: {}]
  %s8 = inlined_call_operand.vmem [shape: f32[1,8], index: 8, kind: input, shape index: {}]
  %s9 = inlined_call_operand.vmem [shape: f32[16,8], index: 9, kind: output, shape index: {}]
  %s10 = sld [smem:[#allocation0]]
  $region81: #{sage_forward.1} parent=0
    _
  %s12 = ssub.s32 1, %s10
  %s13 = scalar_select 0, %s12, %s10
  loop: start=0, step=1, limit=4
  $region2: #{sage_forward.1} parent=0 // loop_pre_header
    _
  $region3: #{sage_forward.1} parent=0 // loop_header
    %s15 = sphi 0, %s19
    %p16 = scmp.ge.s32.totalorder %s15, 4
    %s22 = sphi 0, %s34
    %s23 = sphi 0, %s30
    %s24 = sphi 0, %s22
    %s25 = sphi 0, %s23
    %s26 = sphi 0, %s24
    %s27 = sphi 0, %s25
    %s35 = sphi 0, %s35
    %s37 = sphi 0, %s35
    %s38 = sphi 0, %s37
    %s52 = sphi 0, %s38
    %s58 = sphi 0, %s60
    %s61 = sphi 0, %s58
    %s62 = sphi 0, %s61
    %s78 = sphi 0, %s62
    %s82 = sphi 0, %s82
    %s84 = sphi 0, %s82
    %s85 = sphi 0, %s84
    %s99 = sphi 0, %s85
    %s103 = sphi 0, %s103
    %s105 = sphi 0, %s103
    %s106 = sphi 0, %s105
    %s120 = sphi 0, %s106
    %s124 = sphi 0, %s124
    %s126 = sphi 0, %s124
    %s127 = sphi 0, %s126
    %s141 = sphi 0, %s127
    %s145 = sphi 0, %s145
    %s147 = sphi 0, %s145
    %s148 = sphi 0, %s147
    %s162 = sphi 0, %s148
    %s166 = sphi 0, %s166
    %s168 = sphi 0, %s166
    %s169 = sphi 0, %s168
    %s183 = sphi 0, %s169
    %s187 = sphi 0, %s187
    %s189 = sphi 0, %s187
    %s190 = sphi 0, %s189
    %s204 = sphi 0, %s190
    %s208 = sphi 0, %s208
    %s210 = sphi 0, %s208
    %s211 = sphi 0, %s210
    %s225 = sphi 0, %s211
    %s229 = sphi 0, %s229
    %s231 = sphi 0, %s229
    %s232 = sphi 0, %s231
    %s246 = sphi 0, %s232
  $region4: #{sage_forward.1} parent=0 // loop_header_branch
    %18 = sbr.rel (%p16) target = $region8
  $region5: #{sage_forward.1} parent=0 // loop_body
    %s20 = ssub.s32 %s15, 1
    %s21 = ssub.s32 %s15, 2
    %s28 = sadd.s32 1, %s23
    %p29 = scmp.ge.s32.totalorder %s28, 1
    %s30 = scalar_select %p29, 0, %s28
    %s31 = sadd.s32 1, %s22
    %s32 = scalar_select %p29, %s31, %s22
    %p33 = scmp.ge.s32.totalorder %s32, 2
    %s34 = scalar_select %p33, 0, %s32
    %s36 = sadd.s32 %s35, 1
    %p39 = scmp.eq.s32.totalorder %s15, 1
    %p40 = scmp.ne.s32.totalorder %s35, %s37
    %p41 = scmp.eq.s32.totalorder %s15, 0
    %p42 = por %p40, %p41
    %p43 = scmp.ne.s32.totalorder %s35, %s37
    %p44 = scmp.eq.s32.totalorder %s20, 1
    %p45 = por %p43, %p44
    %p46 = scmp.ne.s32.totalorder %s37, %s38
    %p47 = scmp.eq.s32.totalorder %s20, 0
    %p48 = por %p46, %p47
    %p49 = scmp.ne.s32.totalorder %s37, %s38
    %p50 = scmp.eq.s32.totalorder %s21, 1
    %p51 = por %p49, %p50
    %p53 = scmp.ne.s32.totalorder %s38, %s52
    %p54 = scmp.eq.s32.totalorder %s21, 0
    %p55 = por %p53, %p54
    %s56 = ssub.s32 %s23, %s30
    %p57 = scmp.eq.s32.totalorder %s56, 0
    %s59 = sadd.s32 %s58, 1
    %s60 = scalar_select %p57, %s58, %s59
    %p63 = pneg %p57
    %p64 = scmp.eq.s32.totalorder %s15, 1
    %p65 = por %p63, %p64
    %p66 = scmp.ne.s32.totalorder %s58, %s61
    %p67 = scmp.eq.s32.totalorder %s15, 0
    %p68 = por %p66, %p67
    %p69 = scmp.ne.s32.totalorder %s58, %s61
    %p70 = scmp.eq.s32.totalorder %s20, 1
    %p71 = por %p69, %p70
    %p72 = scmp.ne.s32.totalorder %s61, %s62
    %p73 = scmp.eq.s32.totalorder %s20, 0
    %p74 = por %p72, %p73
    %p75 = scmp.ne.s32.totalorder %s61, %s62
    %p76 = scmp.eq.s32.totalorder %s21, 1
    %p77 = por %p75, %p76
    %p79 = scmp.ne.s32.totalorder %s62, %s78
    %p80 = scmp.eq.s32.totalorder %s21, 0
    %p81 = por %p79, %p80
    %s83 = sadd.s32 %s82, 1
    %p86 = scmp.eq.s32.totalorder %s15, 1
    %p87 = scmp.ne.s32.totalorder %s82, %s84
    %p88 = scmp.eq.s32.totalorder %s15, 0
    %p89 = por %p87, %p88
    %p90 = scmp.ne.s32.totalorder %s82, %s84
    %p91 = scmp.eq.s32.totalorder %s20, 1
    %p92 = por %p90, %p91
    %p93 = scmp.ne.s32.totalorder %s84, %s85
    %p94 = scmp.eq.s32.totalorder %s20, 0
    %p95 = por %p93, %p94
    %p96 = scmp.ne.s32.totalorder %s84, %s85
    %p97 = scmp.eq.s32.totalorder %s21, 1
    %p98 = por %p96, %p97
    %p100 = scmp.ne.s32.totalorder %s85, %s99
    %p101 = scmp.eq.s32.totalorder %s21, 0
    %p102 = por %p100, %p101
    %s104 = sadd.s32 %s103, 1
    %p107 = scmp.eq.s32.totalorder %s15, 1
    %p108 = scmp.ne.s32.totalorder %s103, %s105
    %p109 = scmp.eq.s32.totalorder %s15, 0
    %p110 = por %p108, %p109
    %p111 = scmp.ne.s32.totalorder %s103, %s105
    %p112 = scmp.eq.s32.totalorder %s20, 1
    %p113 = por %p111, %p112
    %p114 = scmp.ne.s32.totalorder %s105, %s106
    %p115 = scmp.eq.s32.totalorder %s20, 0
    %p116 = por %p114, %p115
    %p117 = scmp.ne.s32.totalorder %s105, %s106
    %p118 = scmp.eq.s32.totalorder %s21, 1
    %p119 = por %p117, %p118
    %p121 = scmp.ne.s32.totalorder %s106, %s120
    %p122 = scmp.eq.s32.totalorder %s21, 0
    %p123 = por %p121, %p122
    %s125 = sadd.s32 %s124, 1
    %p128 = scmp.eq.s32.totalorder %s15, 1
    %p129 = scmp.ne.s32.totalorder %s124, %s126
    %p130 = scmp.eq.s32.totalorder %s15, 0
    %p131 = por %p129, %p130
    %p132 = scmp.ne.s32.totalorder %s124, %s126
    %p133 = scmp.eq.s32.totalorder %s20, 1
    %p134 = por %p132, %p133
    %p135 = scmp.ne.s32.totalorder %s126, %s127
    %p136 = scmp.eq.s32.totalorder %s20, 0
    %p137 = por %p135, %p136
    %p138 = scmp.ne.s32.totalorder %s126, %s127
    %p139 = scmp.eq.s32.totalorder %s21, 1
    %p140 = por %p138, %p139
    %p142 = scmp.ne.s32.totalorder %s127, %s141
    %p143 = scmp.eq.s32.totalorder %s21, 0
    %p144 = por %p142, %p143
    %s146 = sadd.s32 %s145, 1
    %p149 = scmp.eq.s32.totalorder %s15, 1
    %p150 = scmp.ne.s32.totalorder %s145, %s147
    %p151 = scmp.eq.s32.totalorder %s15, 0
    %p152 = por %p150, %p151
    %p153 = scmp.ne.s32.totalorder %s145, %s147
    %p154 = scmp.eq.s32.totalorder %s20, 1
    %p155 = por %p153, %p154
    %p156 = scmp.ne.s32.totalorder %s147, %s148
    %p157 = scmp.eq.s32.totalorder %s20, 0
    %p158 = por %p156, %p157
    %p159 = scmp.ne.s32.totalorder %s147, %s148
    %p160 = scmp.eq.s32.totalorder %s21, 1
    %p161 = por %p159, %p160
    %p163 = scmp.ne.s32.totalorder %s148, %s162
    %p164 = scmp.eq.s32.totalorder %s21, 0
    %p165 = por %p163, %p164
    %s167 = sadd.s32 %s166, 1
    %p170 = scmp.eq.s32.totalorder %s15, 1
    %p171 = scmp.ne.s32.totalorder %s166, %s168
    %p172 = scmp.eq.s32.totalorder %s15, 0
    %p173 = por %p171, %p172
    %p174 = scmp.ne.s32.totalorder %s166, %s168
    %p175 = scmp.eq.s32.totalorder %s20, 1
    %p176 = por %p174, %p175
    %p177 = scmp.ne.s32.totalorder %s168, %s169
    %p178 = scmp.eq.s32.totalorder %s20, 0
    %p179 = por %p177, %p178
    %p180 = scmp.ne.s32.totalorder %s168, %s169
    %p181 = scmp.eq.s32.totalorder %s21, 1
    %p182 = por %p180, %p181
    %p184 = scmp.ne.s32.totalorder %s169, %s183
    %p185 = scmp.eq.s32.totalorder %s21, 0
    %p186 = por %p184, %p185
    %s188 = sadd.s32 %s187, 1
    %p191 = scmp.eq.s32.totalorder %s15, 1
    %p192 = scmp.ne.s32.totalorder %s187, %s189
    %p193 = scmp.eq.s32.totalorder %s15, 0
    %p194 = por %p192, %p193
    %p195 = scmp.ne.s32.totalorder %s187, %s189
    %p196 = scmp.eq.s32.totalorder %s20, 1
    %p197 = por %p195, %p196
    %p198 = scmp.ne.s32.totalorder %s189, %s190
    %p199 = scmp.eq.s32.totalorder %s20, 0
    %p200 = por %p198, %p199
    %p201 = scmp.ne.s32.totalorder %s189, %s190
    %p202 = scmp.eq.s32.totalorder %s21, 1
    %p203 = por %p201, %p202
    %p205 = scmp.ne.s32.totalorder %s190, %s204
    %p206 = scmp.eq.s32.totalorder %s21, 0
    %p207 = por %p205, %p206
    %s209 = sadd.s32 %s208, 1
    %p212 = scmp.eq.s32.totalorder %s15, 1
    %p213 = scmp.ne.s32.totalorder %s208, %s210
    %p214 = scmp.eq.s32.totalorder %s15, 0
    %p215 = por %p213, %p214
    %p216 = scmp.ne.s32.totalorder %s208, %s210
    %p217 = scmp.eq.s32.totalorder %s20, 1
    %p218 = por %p216, %p217
    %p219 = scmp.ne.s32.totalorder %s210, %s211
    %p220 = scmp.eq.s32.totalorder %s20, 0
    %p221 = por %p219, %p220
    %p222 = scmp.ne.s32.totalorder %s210, %s211
    %p223 = scmp.eq.s32.totalorder %s21, 1
    %p224 = por %p222, %p223
    %p226 = scmp.ne.s32.totalorder %s211, %s225
    %p227 = scmp.eq.s32.totalorder %s21, 0
    %p228 = por %p226, %p227
    %s230 = sadd.s32 %s229, 1
    %p233 = scmp.eq.s32.totalorder %s15, 1
    %p234 = scmp.ne.s32.totalorder %s229, %s231
    %p235 = scmp.eq.s32.totalorder %s15, 0
    %p236 = por %p234, %p235
    %p237 = scmp.ne.s32.totalorder %s229, %s231
    %p238 = scmp.eq.s32.totalorder %s20, 1
    %p239 = por %p237, %p238
    %p240 = scmp.ne.s32.totalorder %s231, %s232
    %p241 = scmp.eq.s32.totalorder %s20, 0
    %p242 = por %p240, %p241
    %p243 = scmp.ne.s32.totalorder %s231, %s232
    %p244 = scmp.eq.s32.totalorder %s21, 1
    %p245 = por %p243, %p244
    %p247 = scmp.ne.s32.totalorder %s232, %s246
    %p248 = scmp.eq.s32.totalorder %s21, 0
    %p249 = por %p247, %p248
    %p250 = scmp.le.s32.totalorder 1, %s15
    %p251 = scmp.lt.s32.totalorder %s15, 3
    %p252 = pnand %p250, %p251
    %p253 = pneg %p252
    // Predicated region
    $region9: #{sage_forward.1} parent=5 // pred_check
      _
    $region10: #{sage_forward.1} parent=5 // pred_check_branch
      %255 = sbr.rel (%p252) target = $region12
    $region11: #{sage_forward.1} parent=5 // pred_region
      %s256 = ssub.s32 %s15, 1
      // Predicated region
      $region13: #{sage_forward.1} parent=11 // pred_check
        %p257 = pneg %p48
      $region14: #{sage_forward.1} parent=11 // pred_check_branch
        %259 = sbr.rel (%p257) target = $region16
      $region15: #{sage_forward.1} parent=11 // pred_region
        _
      $region16: #{sage_forward.1} parent=11 // pred_fallthru
        _
      // Predicated region
      $region17: #{sage_forward.1} parent=11 // pred_check
        %p260 = pneg %p74
      $region18: #{sage_forward.1} parent=11 // pred_check_branch
        %262 = sbr.rel (%p260) target = $region20
      $region19: #{sage_forward.1} parent=11 // pred_region
        %s263 = smul.u32 2, %s25
        %p264 = scmp.lt.s32.totalorder %s263, 1
        %s265 = scalar_select %p264, %s263, 1
        %s266 = smul.addr %s265, 8
        %s267 = scalar_lea.vmem %s1, %s266
        %s268 = smul.u32 2, %s25
      $region20: #{sage_forward.1} parent=11 // pred_fallthru
        _
      // Predicated region
      $region21: #{sage_forward.1} parent=11 // pred_check
        %p269 = pneg %p95
      $region22: #{sage_forward.1} parent=11 // pred_check_branch
        %271 = sbr.rel (%p269) target = $region24
      $region23: #{sage_forward.1} parent=11 // pred_region
        _
      $region24: #{sage_forward.1} parent=11 // pred_fallthru
        _
      // Predicated region
      $region25: #{sage_forward.1} parent=11 // pred_check
        %p272 = pneg %p116
      $region26: #{sage_forward.1} parent=11 // pred_check_branch
        %274 = sbr.rel (%p272) target = $region28
      $region27: #{sage_forward.1} parent=11 // pred_region
        _
      $region28: #{sage_forward.1} parent=11 // pred_fallthru
        _
      // Predicated region
      $region29: #{sage_forward.1} parent=11 // pred_check
        %p275 = pneg %p137
      $region30: #{sage_forward.1} parent=11 // pred_check_branch
        %277 = sbr.rel (%p275) target = $region32
      $region31: #{sage_forward.1} parent=11 // pred_region
        _
      $region32: #{sage_forward.1} parent=11 // pred_fallthru
        _
      // Predicated region
      $region33: #{sage_forward.1} parent=11 // pred_check
        %p278 = pneg %p158
      $region34: #{sage_forward.1} parent=11 // pred_check_branch
        %280 = sbr.rel (%p278) target = $region36
      $region35: #{sage_forward.1} parent=11 // pred_region
        _
      $region36: #{sage_forward.1} parent=11 // pred_fallthru
        _
      // Predicated region
      $region37: #{sage_forward.1} parent=11 // pred_check
        %p281 = pneg %p179
      $region38: #{sage_forward.1} parent=11 // pred_check_branch
        %283 = sbr.rel (%p281) target = $region40
      $region39: #{sage_forward.1} parent=11 // pred_region
        _
      $region40: #{sage_forward.1} parent=11 // pred_fallthru
        _
      // Predicated region
      $region41: #{sage_forward.1} parent=11 // pred_check
        %p284 = pneg %p200
      $region42: #{sage_forward.1} parent=11 // pred_check_branch
        %286 = sbr.rel (%p284) target = $region44
      $region43: #{sage_forward.1} parent=11 // pred_region
        _
      $region44: #{sage_forward.1} parent=11 // pred_fallthru
        _
      // Predicated region
      $region45: #{sage_forward.1} parent=11 // pred_check
        %p287 = pneg %p221
      $region46: #{sage_forward.1} parent=11 // pred_check_branch
        %289 = sbr.rel (%p287) target = $region48
      $region47: #{sage_forward.1} parent=11 // pred_region
        _
      $region48: #{sage_forward.1} parent=11 // pred_fallthru
        _
    $region12: #{sage_forward.1} parent=5 // pred_fallthru
      _
    %p290 = scmp.lt.s32.totalorder %s15, 2
    // Predicated region
    $region49: #{sage_forward.1} parent=5 // pred_check
      %p291 = pneg %p290
    $region50: #{sage_forward.1} parent=5 // pred_check_branch
      %293 = sbr.rel (%p291) target = $region52
    $region51: #{sage_forward.1} parent=5 // pred_region
      _
    $region52: #{sage_forward.1} parent=5 // pred_fallthru
      _
    %p294 = scmp.le.s32.totalorder 1, %s15
    %p295 = scmp.lt.s32.totalorder %s15, 3
    %p296 = pnand %p294, %p295
    %p297 = pneg %p296
    // Predicated region
    $region53: #{sage_forward.1} parent=5 // pred_check
      _
    $region54: #{sage_forward.1} parent=5 // pred_check_branch
      %299 = sbr.rel (%p296) target = $region56
    $region55: #{sage_forward.1} parent=5 // pred_region
      %s300 = ssub.s32 %s15, 1
      %p301 = pneg %p48
      %p302 = pneg %p45
      %s303 = smul.u32 2, %s25
      %p304 = scmp.lt.s32.totalorder %s303, 1
      %s305 = scalar_select %p304, %s303, 1
      %s306 = smul.addr %s305, 8
      %s307 = scalar_lea.vmem %s1, %s306
      %p308 = pneg %p74
      %p309 = pneg %p71
      %p310 = pneg %p95
      %p311 = pneg %p92
      %p312 = pneg %p116
      %p313 = pneg %p113
      %p314 = pneg %p137
      %p315 = pneg %p134
      %p316 = pneg %p158
      %p317 = pneg %p155
      %p318 = pneg %p179
      %p319 = pneg %p176
      %p320 = pneg %p200
      %p321 = pneg %p197
      %p322 = pneg %p221
      %p323 = pneg %p218
      %p324 = pneg %p242
      %p325 = pneg %p239
      %s326 = smul.u32 2, %s25
      %p327 = scmp.lt.s32.totalorder %s326, 1
      %s328 = scalar_select %p327, %s326, 1
      %s329 = smul.addr %s328, 8
      %s330 = scalar_lea.vmem %s1, %s329
      %s331 = smul.u32 2, %s25
      %s333 = smul.u32 %s25, 16
      %s334 = sshra.s32 %s333, 3
      %s335 = sand.u32 %s333, 7
      %s336 = smul.addr %s334, 4
      %s337 = scalar_lea.vmem %s0, %s336
      %v338 = vld [vmem:[%s337] sm:$0xf]
      %v339 = vld [vmem:[%s337 + $0x4] sm:$0xf]
      %p340 = scmp.eq.s32.totalorder %s24, 0
      %p341 = scmp.eq.s32.totalorder %s25, 0
      %p342 = pnand %p340, %p341
      %p343 = pneg %p342
      // Predicated region
      $region57: #{sage_forward.1} parent=55 // pred_check
        _
      $region58: #{sage_forward.1} parent=55 // pred_check_branch
        %345 = sbr.rel (%p342) target = $region60
      $region59: #{sage_forward.1} parent=55 // pred_region
        %vm346 = vcmask 64512
        %347 = vst.msk [vmem:[%s9] sm:$0xff] %vm346, 0.0
        %348 = vst.msk [vmem:[%s9 + $0x8] sm:$0xff] %vm346, 0.0
      $region60: #{sage_forward.1} parent=55 // pred_fallthru
        _
      // Predicated region
      $region61: #{sage_forward.1} parent=55 // pred_check
        %p349 = pneg %p340
      $region62: #{sage_forward.1} parent=55 // pred_check_branch
        %351 = sbr.rel (%p349) target = $region64
      $region63: #{sage_forward.1} parent=55 // pred_region
        %v352 = vld [vmem:[%s2] sm:$0xf]
        %v353 = vld [vmem:[%s2 + $0x4] sm:$0xf]
        %v356 = vunpack.c.l.b16 %v338
        %v357 = vunpack.c.l.b16 %v339
        %v358 = vpack.c.b16 %v357, %v356
        %v361 = vunpack.c.l.b16 %v352
        %v362 = vunpack.c.l.b16 %v353
        %v363 = vpack.c.b16 %v362, %v361
        %vm365 = vcmask 130048
        %v367 = vsel %vm365, %v358, 0
        %369 = vmatprep.subr.bf16.mxu0 0
        %370 = vmatpush1.bf16.msra.mxu0 0
        %371 = vmatprep.subr.bf16.mxu0 0
        %372 = vmatpush1.bf16.msra.mxu0 0
        %373 = vmatprep.subr.bf16.mxu0 0
        %374 = vmatpush1.bf16.msra.mxu0 0
        %375 = vmatprep.subr.bf16.mxu0 0
        %376 = vmatpush1.bf16.msra.mxu0 0
        %377 = vmatprep.subr.bf16.mxu0 0
        %378 = vmatpush1.bf16.msra.mxu0 0
        %379 = vmatprep.subr.bf16.mxu0 0
        %380 = vmatpush1.bf16.msra.mxu0 0
        %381 = vmatprep.subr.bf16.mxu0 0
        %382 = vmatpush1.bf16.msra.mxu0 0
        %383 = vmatprep.subr.bf16.mxu0 0
        %384 = vmatpush1.bf16.msra.mxu0 %v363
        %385 = vmatprep.subr.bf16.mxu0 0
        %386 = vmatpush2.bf16.msra.mxu0 0
        %387 = vmatprep.subr.bf16.mxu0 0
        %388 = vmatpush2.bf16.msra.mxu0 0
        %389 = vmatprep.subr.bf16.mxu0 0
        %390 = vmatpush2.bf16.msra.mxu0 0
        %391 = vmatprep.subr.bf16.mxu0 0
        %392 = vmatpush2.bf16.msra.mxu0 0
        %393 = vmatprep.subr.bf16.mxu0 0
        %394 = vmatpush2.bf16.msra.mxu0 0
        %395 = vmatprep.subr.bf16.mxu0 0
        %396 = vmatpush2.bf16.msra.mxu0 0
        %397 = vmatprep.subr.bf16.mxu0 0
        %398 = vmatpush2.bf16.msra.mxu0 0
        %399 = vmatprep.subr.bf16.mxu0 0
        %400 = vmatpush2.bf16.msra.mxu0 0
        %401 = vmatprep.mubr.bf16.mxu0 0
        %402 = vmatmul.mubr.bf16.gmra.mxu0 %v367
        %v403 = vpop.f32.mrf.mxu0
        %v404 = vadd.f32 0.0, %v403
        %v405 = vpop.f32.mrf.mxu0
        %v406 = vpop.f32.mrf.mxu0
        %v407 = vadd.f32 0.0, %v406
        %v408 = vpop.f32.mrf.mxu0
        %409 = vdwg.mxu0
        %vm410 = vcmp.gt.f32.partialorder %v404, 0.0
        %vm411 = vcmp.gt.f32.partialorder %v407, 0.0
        %v412 = vmax.f32 %v404, 1.0
        %v413 = vmax.f32 %v407, 1.0
        %v414 = vrcp.pop %v412
        %v415 = vmul.f32 1.0, %v414
        %v416 = vrcp.pop %v413
        %v417 = vmul.f32 1.0, %v416
        %v418 = vsel %vm410, %v415, 0.0
        %v419 = vsel %vm411, %v417, 0.0
        %421 = vset.pattern.permute.xlu0 16
        %422 = vperm.xlu0 %421, %v418
        %v423 = vpop.permute.xlu0 %422
        %426 = vset.pattern.permute.xlu0 16
        %427 = vperm.xlu0 %426, %v419
        %v428 = vpop.permute.xlu0 %427
        %v430 = vmul.f32 %v404, %v423
        %v431 = vmul.f32 %v407, %v428
        %v432 = vld [vmem:[%s4] sm:$0xff]
        %v433 = vld [vmem:[%s4 + $0x8] sm:$0xff]
        %v435 = vsel %vm365, %v430, 0
        %v438 = vsel %vm365, %v431, 0
        %440 = vmatprep.subr.mxu0 0.0
        %441 = vmatpush1.msra.mxu0 0.0
        %442 = vmatprep.subr.mxu0 0.0
        %443 = vmatpush1.msra.mxu0 0.0
        %444 = vmatprep.subr.mxu0 0.0
        %445 = vmatpush1.msra.mxu0 0.0
        %446 = vmatprep.subr.mxu0 0.0
        %447 = vmatpush1.msra.mxu0 0.0
        %448 = vmatprep.subr.mxu0 0.0
        %449 = vmatpush1.msra.mxu0 0.0
        %450 = vmatprep.subr.mxu0 0.0
        %451 = vmatpush1.msra.mxu0 0.0
        %452 = vmatprep.subr.mxu0 0.0
        %453 = vmatpush1.msra.mxu0 0.0
        %454 = vmatprep.subr.mxu0 0.0
        %455 = vmatpush1.msra.mxu0 0.0
        %456 = vmatprep.subr.mxu0 0.0
        %457 = vmatpush1.msra.mxu0 0.0
        %458 = vmatprep.subr.mxu0 0.0
        %459 = vmatpush1.msra.mxu0 0.0
        %460 = vmatprep.subr.mxu0 0.0
        %461 = vmatpush1.msra.mxu0 0.0
        %462 = vmatprep.subr.mxu0 0.0
        %463 = vmatpush1.msra.mxu0 0.0
        %464 = vmatprep.subr.mxu0 0.0
        %465 = vmatpush1.msra.mxu0 0.0
        %466 = vmatprep.subr.mxu0 0.0
        %467 = vmatpush1.msra.mxu0 0.0
        %468 = vmatprep.subr.mxu0 0.0
        %469 = vmatpush1.msra.mxu0 %v433
        %470 = vmatprep.subr.mxu0 0.0
        %471 = vmatpush1.msra.mxu0 %v432
        %472 = vmatprep.subr.mxu0 0.0
        %473 = vmatpush2.msra.mxu0 0.0
        %474 = vmatprep.subr.mxu0 0.0
        %475 = vmatpush2.msra.mxu0 0.0
        %476 = vmatprep.subr.mxu0 0.0
        %477 = vmatpush2.msra.mxu0 0.0
        %478 = vmatprep.subr.mxu0 0.0
        %479 = vmatpush2.msra.mxu0 0.0
        %480 = vmatprep.subr.mxu0 0.0
        %481 = vmatpush2.msra.mxu0 0.0
        %482 = vmatprep.subr.mxu0 0.0
        %483 = vmatpush2.msra.mxu0 0.0
        %484 = vmatprep.subr.mxu0 0.0
        %485 = vmatpush2.msra.mxu0 0.0
        %486 = vmatprep.subr.mxu0 0.0
        %487 = vmatpush2.msra.mxu0 0.0
        %488 = vmatprep.subr.mxu0 0.0
        %489 = vmatpush2.msra.mxu0 0.0
        %490 = vmatprep.subr.mxu0 0.0
        %491 = vmatpush2.msra.mxu0 0.0
        %492 = vmatprep.subr.mxu0 0.0
        %493 = vmatpush2.msra.mxu0 0.0
        %494 = vmatprep.subr.mxu0 0.0
        %495 = vmatpush2.msra.mxu0 0.0
        %496 = vmatprep.subr.mxu0 0.0
        %497 = vmatpush2.msra.mxu0 0.0
        %498 = vmatprep.subr.mxu0 0.0
        %499 = vmatpush2.msra.mxu0 0.0
        %500 = vmatprep.subr.mxu0 0.0
        %501 = vmatpush2.msra.mxu0 0.0
        %502 = vmatprep.subr.mxu0 0.0
        %503 = vmatpush2.msra.mxu0 0.0
        %504 = vmatprep.mubr.f32.mxu0 0.0
        %505 = vmatmul.mubr.f32.gmra.mxu0 %v435
        %v506 = vpop.f32.mrf.mxu0
        %v507 = vadd.f32 0.0, %v506
        %v508 = vpop.f32.mrf.mxu0
        %509 = vmatprep.mubr.f32.mxu0 0.0
        %510 = vmatmul.mubr.f32.gmra.mxu0 %v438
        %v511 = vpop.f32.mrf.mxu0
        %v512 = vadd.f32 0.0, %v511
        %v513 = vpop.f32.mrf.mxu0
        %514 = vdwg.mxu0
        %v515 = vld [vmem:[%s330] sm:$0xff]
        %v516 = vld [vmem:[%s330 + $0x8] sm:$0xff]
        %v517 = vld [vmem:[%s3] sm:$0xff]
        %v518 = vld [vmem:[%s3 + $0x8] sm:$0xff]
        %v520 = vsel %vm365, %v515, 0
        %v523 = vsel %vm365, %v516, 0
        %525 = vmatprep.subr.mxu0 0.0
        %526 = vmatpush1.msra.mxu0 0.0
        %527 = vmatprep.subr.mxu0 0.0
        %528 = vmatpush1.msra.mxu0 0.0
        %529 = vmatprep.subr.mxu0 0.0
        %530 = vmatpush1.msra.mxu0 0.0
        %531 = vmatprep.subr.mxu0 0.0
        %532 = vmatpush1.msra.mxu0 0.0
        %533 = vmatprep.subr.mxu0 0.0
        %534 = vmatpush1.msra.mxu0 0.0
        %535 = vmatprep.subr.mxu0 0.0
        %536 = vmatpush1.msra.mxu0 0.0
        %537 = vmatprep.subr.mxu0 0.0
        %538 = vmatpush1.msra.mxu0 0.0
        %539 = vmatprep.subr.mxu0 0.0
        %540 = vmatpush1.msra.mxu0 0.0
        %541 = vmatprep.subr.mxu0 0.0
        %542 = vmatpush1.msra.mxu0 0.0
        %543 = vmatprep.subr.mxu0 0.0
        %544 = vmatpush1.msra.mxu0 0.0
        %545 = vmatprep.subr.mxu0 0.0
        %546 = vmatpush1.msra.mxu0 0.0
        %547 = vmatprep.subr.mxu0 0.0
        %548 = vmatpush1.msra.mxu0 0.0
        %549 = vmatprep.subr.mxu0 0.0
        %550 = vmatpush1.msra.mxu0 0.0
        %551 = vmatprep.subr.mxu0 0.0
        %552 = vmatpush1.msra.mxu0 0.0
        %553 = vmatprep.subr.mxu0 0.0
        %554 = vmatpush1.msra.mxu0 %v518
        %555 = vmatprep.subr.mxu0 0.0
        %556 = vmatpush1.msra.mxu0 %v517
        %557 = vmatprep.subr.mxu0 0.0
        %558 = vmatpush2.msra.mxu0 0.0
        %559 = vmatprep.subr.mxu0 0.0
        %560 = vmatpush2.msra.mxu0 0.0
        %561 = vmatprep.subr.mxu0 0.0
        %562 = vmatpush2.msra.mxu0 0.0
        %563 = vmatprep.subr.mxu0 0.0
        %564 = vmatpush2.msra.mxu0 0.0
        %565 = vmatprep.subr.mxu0 0.0
        %566 = vmatpush2.msra.mxu0 0.0
        %567 = vmatprep.subr.mxu0 0.0
        %568 = vmatpush2.msra.mxu0 0.0
        %569 = vmatprep.subr.mxu0 0.0
        %570 = vmatpush2.msra.mxu0 0.0
        %571 = vmatprep.subr.mxu0 0.0
        %572 = vmatpush2.msra.mxu0 0.0
        %573 = vmatprep.subr.mxu0 0.0
        %574 = vmatpush2.msra.mxu0 0.0
        %575 = vmatprep.subr.mxu0 0.0
        %576 = vmatpush2.msra.mxu0 0.0
        %577 = vmatprep.subr.mxu0 0.0
        %578 = vmatpush2.msra.mxu0 0.0
        %579 = vmatprep.subr.mxu0 0.0
        %580 = vmatpush2.msra.mxu0 0.0
        %581 = vmatprep.subr.mxu0 0.0
        %582 = vmatpush2.msra.mxu0 0.0
        %583 = vmatprep.subr.mxu0 0.0
        %584 = vmatpush2.msra.mxu0 0.0
        %585 = vmatprep.subr.mxu0 0.0
        %586 = vmatpush2.msra.mxu0 0.0
        %587 = vmatprep.subr.mxu0 0.0
        %588 = vmatpush2.msra.mxu0 0.0
        %589 = vmatprep.mubr.f32.mxu0 0.0
        %590 = vmatmul.mubr.f32.gmra.mxu0 %v520
        %v591 = vpop.f32.mrf.mxu0
        %v592 = vadd.f32 %v507, %v591
        %v593 = vpop.f32.mrf.mxu0
        %594 = vmatprep.mubr.f32.mxu0 0.0
        %595 = vmatmul.mubr.f32.gmra.mxu0 %v523
        %v596 = vpop.f32.mrf.mxu0
        %v597 = vadd.f32 %v512, %v596
        %v598 = vpop.f32.mrf.mxu0
        %599 = vdwg.mxu0
        %v600 = vld [vmem:[%s5] sm:$0x1]
        %v602 = vlaneseq
        %v603 = vshrl.u32 %v602, 7
        %v604 = vsub.s32 0, %v603
        %v605 = vrot.slane %v600, %v604
        %v607 = vadd.f32 %v592, %v605
        %v608 = vadd.f32 %v597, %v605
        %v609 = vmax.f32 %v607, 0.0
        %v610 = vmax.f32 %v608, 0.0
        %s611 = scalar_lea.vmem [#allocation2], %s333
        %vm612 = vcmask 261120
        %613 = vst.msk [vmem:[%s611] sm:$0xff] %vm612, %v609
        %614 = vst.msk [vmem:[%s611 + $0x8] sm:$0xff] %vm612, %v610
        %615 = vrot.lane.b32.xlu0 %v418, 112
        %v616 = vpop.permute.xlu0 %615
        %617 = vrot.lane.b32.xlu0 %v419, 112
        %v618 = vpop.permute.xlu0 %617
        %s621 = scalar_lea.vmem [#allocation4], %s333
        %vm622 = vcmask 7168
        %623 = vst.msk [vmem:[%s621] sm:$0xff] %vm622, %v616
        %624 = vst.msk [vmem:[%s621 + $0x8] sm:$0xff] %vm622, %v618
        %v625 = vld [vmem:[%s7] sm:$0xff]
        %v626 = vld [vmem:[%s7 + $0x8] sm:$0xff]
        %v627 = vld [vmem:[%s7 + $0x10] sm:$0xff]
        %v628 = vld [vmem:[%s7 + $0x18] sm:$0xff]
        %v630 = vsel %vm612, %v609, 0
        %v633 = vsel %vm612, %v610, 0
        %635 = vmatprep.subr.mxu0 0.0
        %636 = vmatpush1.msra.mxu0 0.0
        %637 = vmatprep.subr.mxu0 0.0
        %638 = vmatpush1.msra.mxu0 0.0
        %639 = vmatprep.subr.mxu0 0.0
        %640 = vmatpush1.msra.mxu0 0.0
        %641 = vmatprep.subr.mxu0 0.0
        %642 = vmatpush1.msra.mxu0 0.0
        %643 = vmatprep.subr.mxu0 0.0
        %644 = vmatpush1.msra.mxu0 0.0
        %645 = vmatprep.subr.mxu0 0.0
        %646 = vmatpush1.msra.mxu0 0.0
        %647 = vmatprep.subr.mxu0 0.0
        %648 = vmatpush1.msra.mxu0 0.0
        %649 = vmatprep.subr.mxu0 0.0
        %650 = vmatpush1.msra.mxu0 0.0
        %651 = vmatprep.subr.mxu0 0.0
        %652 = vmatpush1.msra.mxu0 0.0
        %653 = vmatprep.subr.mxu0 0.0
        %654 = vmatpush1.msra.mxu0 0.0
        %655 = vmatprep.subr.mxu0 0.0
        %656 = vmatpush1.msra.mxu0 0.0
        %657 = vmatprep.subr.mxu0 0.0
        %658 = vmatpush1.msra.mxu0 0.0
        %659 = vmatprep.subr.mxu0 0.0
        %660 = vmatpush1.msra.mxu0 %v628
        %661 = vmatprep.subr.mxu0 0.0
        %662 = vmatpush1.msra.mxu0 %v627
        %663 = vmatprep.subr.mxu0 0.0
        %664 = vmatpush1.msra.mxu0 %v626
        %665 = vmatprep.subr.mxu0 0.0
        %666 = vmatpush1.msra.mxu0 %v625
        %667 = vmatprep.subr.mxu0 0.0
        %668 = vmatpush2.msra.mxu0 0.0
        %669 = vmatprep.subr.mxu0 0.0
        %670 = vmatpush2.msra.mxu0 0.0
        %671 = vmatprep.subr.mxu0 0.0
        %672 = vmatpush2.msra.mxu0 0.0
        %673 = vmatprep.subr.mxu0 0.0
        %674 = vmatpush2.msra.mxu0 0.0
        %675 = vmatprep.subr.mxu0 0.0
        %676 = vmatpush2.msra.mxu0 0.0
        %677 = vmatprep.subr.mxu0 0.0
        %678 = vmatpush2.msra.mxu0 0.0
        %679 = vmatprep.subr.mxu0 0.0
        %680 = vmatpush2.msra.mxu0 0.0
        %681 = vmatprep.subr.mxu0 0.0
        %682 = vmatpush2.msra.mxu0 0.0
        %683 = vmatprep.subr.mxu0 0.0
        %684 = vmatpush2.msra.mxu0 0.0
        %685 = vmatprep.subr.mxu0 0.0
        %686 = vmatpush2.msra.mxu0 0.0
        %687 = vmatprep.subr.mxu0 0.0
        %688 = vmatpush2.msra.mxu0 0.0
        %689 = vmatprep.subr.mxu0 0.0
        %690 = vmatpush2.msra.mxu0 0.0
        %691 = vmatprep.subr.mxu0 0.0
        %692 = vmatpush2.msra.mxu0 0.0
        %693 = vmatprep.subr.mxu0 0.0
        %694 = vmatpush2.msra.mxu0 0.0
        %695 = vmatprep.subr.mxu0 0.0
        %696 = vmatpush2.msra.mxu0 0.0
        %697 = vmatprep.subr.mxu0 0.0
        %698 = vmatpush2.msra.mxu0 0.0
        %699 = vmatprep.mubr.f32.mxu0 0.0
        %700 = vmatmul.mubr.f32.gmra.mxu0 %v630
        %v701 = vpop.f32.mrf.mxu0
        %v702 = vadd.f32 0.0, %v701
        %v703 = vpop.f32.mrf.mxu0
        %704 = vmatprep.mubr.f32.mxu0 0.0
        %705 = vmatmul.mubr.f32.gmra.mxu0 %v633
        %v706 = vpop.f32.mrf.mxu0
        %v707 = vadd.f32 0.0, %v706
        %v708 = vpop.f32.mrf.mxu0
        %709 = vdwg.mxu0
        %v710 = vpack.c.bf16 %v707, %v702
        %v712 = vunpack.c.l.b16 %v710
        %v713 = vunpack.c.h.b16 %v710
        %v714 = vpack.c.b16 %v712, %v712
        %v715 = vpack.c.b16 %v713, %v713
        %s718 = smul.addr %s334, 4
        %s719 = scalar_lea.vmem [#allocation3], %s718
        %vm720 = vcmask 60416
        %721 = vst.msk [vmem:[%s719] sm:$0xf] %vm720, %v714
        %722 = vst.msk [vmem:[%s719 + $0x4] sm:$0xf] %vm720, %v715
      $region64: #{sage_forward.1} parent=55 // pred_fallthru
        _
      %p723 = scmp.eq.s32.totalorder %s24, 1
      // Predicated region
      $region65: #{sage_forward.1} parent=55 // pred_check
        %p724 = pneg %p723
      $region66: #{sage_forward.1} parent=55 // pred_check_branch
        %726 = sbr.rel (%p724) target = $region68
      $region67: #{sage_forward.1} parent=55 // pred_region
        %s727 = scalar_lea.vmem [#allocation4], %s333
        %v728 = vld [vmem:[%s727] sm:$0xff]
        %v729 = vld [vmem:[%s727 + $0x8] sm:$0xff]
        %v730 = vld [vmem:[#allocation3] sm:$0xf]
        %v731 = vld [vmem:[#allocation3 + $0x4] sm:$0xf]
        %v734 = vunpack.c.l.b16 %v338
        %v735 = vunpack.c.l.b16 %v339
        %v736 = vpack.c.b16 %v735, %v734
        %v739 = vunpack.c.l.b16 %v730
        %v740 = vunpack.c.l.b16 %v731
        %v741 = vpack.c.b16 %v740, %v739
        %vm743 = vcmask 130048
        %v745 = vsel %vm743, %v736, 0
        %747 = vmatprep.subr.bf16.mxu0 0
        %748 = vmatpush1.bf16.msra.mxu0 0
        %749 = vmatprep.subr.bf16.mxu0 0
        %750 = vmatpush1.bf16.msra.mxu0 0
        %751 = vmatprep.subr.bf16.mxu0 0
        %752 = vmatpush1.bf16.msra.mxu0 0
        %753 = vmatprep.subr.bf16.mxu0 0
        %754 = vmatpush1.bf16.msra.mxu0 0
        %755 = vmatprep.subr.bf16.mxu0 0
        %756 = vmatpush1.bf16.msra.mxu0 0
        %757 = vmatprep.subr.bf16.mxu0 0
        %758 = vmatpush1.bf16.msra.mxu0 0
        %759 = vmatprep.subr.bf16.mxu0 0
        %760 = vmatpush1.bf16.msra.mxu0 0
        %761 = vmatprep.subr.bf16.mxu0 0
        %762 = vmatpush1.bf16.msra.mxu0 %v741
        %763 = vmatprep.subr.bf16.mxu0 0
        %764 = vmatpush2.bf16.msra.mxu0 0
        %765 = vmatprep.subr.bf16.mxu0 0
        %766 = vmatpush2.bf16.msra.mxu0 0
        %767 = vmatprep.subr.bf16.mxu0 0
        %768 = vmatpush2.bf16.msra.mxu0 0
        %769 = vmatprep.subr.bf16.mxu0 0
        %770 = vmatpush2.bf16.msra.mxu0 0
        %771 = vmatprep.subr.bf16.mxu0 0
        %772 = vmatpush2.bf16.msra.mxu0 0
        %773 = vmatprep.subr.bf16.mxu0 0
        %774 = vmatpush2.bf16.msra.mxu0 0
        %775 = vmatprep.subr.bf16.mxu0 0
        %776 = vmatpush2.bf16.msra.mxu0 0
        %777 = vmatprep.subr.bf16.mxu0 0
        %778 = vmatpush2.bf16.msra.mxu0 0
        %779 = vmatprep.mubr.bf16.mxu0 0
        %780 = vmatmul.mubr.bf16.gmra.mxu0 %v745
        %v781 = vpop.f32.mrf.mxu0
        %v782 = vadd.f32 0.0, %v781
        %v783 = vpop.f32.mrf.mxu0
        %v784 = vpop.f32.mrf.mxu0
        %v785 = vadd.f32 0.0, %v784
        %v786 = vpop.f32.mrf.mxu0
        %787 = vdwg.mxu0
        %789 = vset.pattern.permute.xlu0 0
        %790 = vperm.xlu0 %789, %v728
        %v791 = vpop.permute.xlu0 %790
        %794 = vset.pattern.permute.xlu0 0
        %795 = vperm.xlu0 %794, %v729
        %v796 = vpop.permute.xlu0 %795
        %v798 = vmul.f32 %v782, %v791
        %v799 = vmul.f32 %v785, %v796
        %s800 = scalar_lea.vmem [#allocation2], %s333
        %v801 = vld [vmem:[%s800] sm:$0xff]
        %v802 = vld [vmem:[%s800 + $0x8] sm:$0xff]
        %v803 = vld [vmem:[%s6] sm:$0xff]
        %v804 = vld [vmem:[%s6 + $0x8] sm:$0xff]
        %v805 = vld [vmem:[%s6 + $0x10] sm:$0xff]
        %v806 = vld [vmem:[%s6 + $0x18] sm:$0xff]
        %vm807 = vcmask 261120
        %v809 = vsel %vm807, %v801, 0
        %v812 = vsel %vm807, %v802, 0
        %814 = vmatprep.subr.mxu0 0.0
        %815 = vmatpush1.msra.mxu0 0.0
        %816 = vmatprep.subr.mxu0 0.0
        %817 = vmatpush1.msra.mxu0 0.0
        %818 = vmatprep.subr.mxu0 0.0
        %819 = vmatpush1.msra.mxu0 0.0
        %820 = vmatprep.subr.mxu0 0.0
        %821 = vmatpush1.msra.mxu0 0.0
        %822 = vmatprep.subr.mxu0 0.0
        %823 = vmatpush1.msra.mxu0 0.0
        %824 = vmatprep.subr.mxu0 0.0
        %825 = vmatpush1.msra.mxu0 0.0
        %826 = vmatprep.subr.mxu0 0.0
        %827 = vmatpush1.msra.mxu0 0.0
        %828 = vmatprep.subr.mxu0 0.0
        %829 = vmatpush1.msra.mxu0 0.0
        %830 = vmatprep.subr.mxu0 0.0
        %831 = vmatpush1.msra.mxu0 0.0
        %832 = vmatprep.subr.mxu0 0.0
        %833 = vmatpush1.msra.mxu0 0.0
        %834 = vmatprep.subr.mxu0 0.0
        %835 = vmatpush1.msra.mxu0 0.0
        %836 = vmatprep.subr.mxu0 0.0
        %837 = vmatpush1.msra.mxu0 0.0
        %838 = vmatprep.subr.mxu0 0.0
        %839 = vmatpush1.msra.mxu0 %v806
        %840 = vmatprep.subr.mxu0 0.0
        %841 = vmatpush1.msra.mxu0 %v805
        %842 = vmatprep.subr.mxu0 0.0
        %843 = vmatpush1.msra.mxu0 %v804
        %844 = vmatprep.subr.mxu0 0.0
        %845 = vmatpush1.msra.mxu0 %v803
        %846 = vmatprep.subr.mxu0 0.0
        %847 = vmatpush2.msra.mxu0 0.0
        %848 = vmatprep.subr.mxu0 0.0
        %849 = vmatpush2.msra.mxu0 0.0
        %850 = vmatprep.subr.mxu0 0.0
        %851 = vmatpush2.msra.mxu0 0.0
        %852 = vmatprep.subr.mxu0 0.0
        %853 = vmatpush2.msra.mxu0 0.0
        %854 = vmatprep.subr.mxu0 0.0
        %855 = vmatpush2.msra.mxu0 0.0
        %856 = vmatprep.subr.mxu0 0.0
        %857 = vmatpush2.msra.mxu0 0.0
        %858 = vmatprep.subr.mxu0 0.0
        %859 = vmatpush2.msra.mxu0 0.0
        %860 = vmatprep.subr.mxu0 0.0
        %861 = vmatpush2.msra.mxu0 0.0
        %862 = vmatprep.subr.mxu0 0.0
        %863 = vmatpush2.msra.mxu0 0.0
        %864 = vmatprep.subr.mxu0 0.0
        %865 = vmatpush2.msra.mxu0 0.0
        %866 = vmatprep.subr.mxu0 0.0
        %867 = vmatpush2.msra.mxu0 0.0
        %868 = vmatprep.subr.mxu0 0.0
        %869 = vmatpush2.msra.mxu0 0.0
        %870 = vmatprep.subr.mxu0 0.0
        %871 = vmatpush2.msra.mxu0 0.0
        %872 = vmatprep.subr.mxu0 0.0
        %873 = vmatpush2.msra.mxu0 0.0
        %874 = vmatprep.subr.mxu0 0.0
        %875 = vmatpush2.msra.mxu0 0.0
        %876 = vmatprep.subr.mxu0 0.0
        %877 = vmatpush2.msra.mxu0 0.0
        %878 = vmatprep.mubr.f32.mxu0 0.0
        %879 = vmatmul.mubr.f32.gmra.mxu0 %v809
        %v880 = vpop.f32.mrf.mxu0
        %v881 = vadd.f32 %v798, %v880
        %v882 = vpop.f32.mrf.mxu0
        %883 = vmatprep.mubr.f32.mxu0 0.0
        %884 = vmatmul.mubr.f32.gmra.mxu0 %v812
        %v885 = vpop.f32.mrf.mxu0
        %v886 = vadd.f32 %v799, %v885
        %v887 = vpop.f32.mrf.mxu0
        %888 = vdwg.mxu0
        %v889 = vld [vmem:[%s8] sm:$0x1]
        %v891 = vlaneseq
        %v892 = vshrl.u32 %v891, 7
        %v893 = vsub.s32 0, %v892
        %v894 = vrot.slane %v889, %v893
        %v896 = vadd.f32 %v881, %v894
        %v897 = vadd.f32 %v886, %v894
        %s898 = scalar_lea.vmem %s9, %s333
        %vm899 = vcmask 64512
        %900 = vst.msk [vmem:[%s898] sm:$0xff] %vm899, %v896
        %901 = vst.msk [vmem:[%s898 + $0x8] sm:$0xff] %vm899, %v897
      $region68: #{sage_forward.1} parent=55 // pred_fallthru
        _
      // Predicated region
      $region69: #{sage_forward.1} parent=55 // pred_check
        %p902 = pneg %p239
      $region70: #{sage_forward.1} parent=55 // pred_check_branch
        %904 = sbr.rel (%p902) target = $region72
      $region71: #{sage_forward.1} parent=55 // pred_region
        _
      $region72: #{sage_forward.1} parent=55 // pred_fallthru
        _
      // Predicated region
      $region73: #{sage_forward.1} parent=55 // pred_check
        %p905 = pneg %p239
      $region74: #{sage_forward.1} parent=55 // pred_check_branch
        %907 = sbr.rel (%p905) target = $region76
      $region75: #{sage_forward.1} parent=55 // pred_region
        _
      $region76: #{sage_forward.1} parent=55 // pred_fallthru
        _
    $region56: #{sage_forward.1} parent=5 // pred_fallthru
      _
    %p908 = scmp.le.s32.totalorder 2, %s15
    // Predicated region
    $region77: #{sage_forward.1} parent=5 // pred_check
      %p909 = pneg %p908
    $region78: #{sage_forward.1} parent=5 // pred_check_branch
      %911 = sbr.rel (%p909) target = $region80
    $region79: #{sage_forward.1} parent=5 // pred_region
      %s912 = ssub.s32 %s15, 2
    $region80: #{sage_forward.1} parent=5 // pred_fallthru
      _
  $region6: #{sage_forward.1} parent=0 // loop_footer
    %s19 = sadd.s32 1, %s15
  $region7: #{sage_forward.1} parent=0 // loop_footer_branch
    %14 = sbr.rel target = $region3
  $region8: #{sage_forward.1} parent=0 // loop_exit
    _

</llo_original>
